<compile_context>
chip_gen: v7x
topology: tpu7x:2x2x1
jax: 0.10.0
libtpu: 0.0.40
codegen_flags: <defaults>
</compile_context>

<pallas_src>
import math
import functools

import jax
import jax.numpy as jnp
from jax.experimental import pallas as pl
from jax.experimental.pallas import tpu as pltpu


def _round_up(x, m):
    return ((x + m - 1) // m) * m


def _gather_embed_kernel(ids_ref, table_ref, out_ref, rows_ref, sem,
                         *, scale, tile_n):
    # ids_ref:   (N_pad,)            int32, SMEM (scalar-prefetched, pre-clamped)
    # table_ref: (vocab, d_model)    HBM (pl.ANY) — rows are DMA'd on demand
    # out_ref:   (tile_n, d_model)   VMEM output tile
    # rows_ref:  (tile_n, d_model)   VMEM gather landing buffer (scratch)
    # sem:       scalar DMA semaphore shared by all row copies of this tile
    base = pl.program_id(0) * tile_n

    # Issue all row-gather DMAs for this tile (they overlap each other).
    @pl.loop(0, tile_n)
    def _start(j):
        tok = ids_ref[base + j]
        pltpu.make_async_copy(
            table_ref.at[pl.ds(tok, 1)],      # (1, d_model) row in HBM
            rows_ref.at[pl.ds(j, 1)],         # (1, d_model) slot in VMEM
            sem,
        ).start()

    # Drain the semaphore: one wait per row copy (all copies are equal-sized).
    @pl.loop(0, tile_n)
    def _wait(j):
        pltpu.make_async_copy(
            table_ref.at[pl.ds(0, 1)],        # dummy src of matching shape
            rows_ref.at[pl.ds(j, 1)],
            sem,
        ).wait()

    # Scale on the VPU (free slack — the kernel is HBM/DMA bound).
    out_ref[...] = (rows_ref[...] * scale).astype(out_ref.dtype)


def token_embedding(x, table, *, tile_n=256):
    """x: (batch, seq) int token ids -> (batch, seq, d_model), table dtype."""
    vocab, d_model = table.shape
    B, S = x.shape
    N = B * S
    scale = math.sqrt(d_model)

    # Clamp ids so the row DMA is always in range (PyTorch would raise on OOB).
    ids = jnp.clip(x.reshape(-1).astype(jnp.int32), 0, vocab - 1)

    # Pick the token tile and pad the flattened token dim to a multiple of it.
    tile_n = int(min(tile_n, _round_up(N, 8)))
    n_pad = _round_up(N, tile_n)
    if n_pad != N:
        ids = jnp.concatenate([ids, jnp.zeros((n_pad - N,), jnp.int32)])

    kernel = functools.partial(_gather_embed_kernel, scale=scale, tile_n=tile_n)

    out_flat = pl.pallas_call(
        kernel,
        out_shape=jax.ShapeDtypeStruct((n_pad, d_model), table.dtype),
        grid_spec=pltpu.PrefetchScalarGridSpec(
            num_scalar_prefetch=1,                     # ids -> SMEM
            grid=(n_pad // tile_n,),
            in_specs=[
                pl.BlockSpec(memory_space=pl.ANY),     # table stays in HBM
            ],
            out_specs=pl.BlockSpec((tile_n, d_model), lambda i, ids: (i, 0)),
            scratch_shapes=[
                pltpu.VMEM((tile_n, d_model), table.dtype),  # gather buffer
                pltpu.SemaphoreType.DMA(()),                 # shared DMA sem
            ],
        ),
        compiler_params=pltpu.CompilerParams(
            dimension_semantics=("parallel",)),        # v7x: split tiles over 2 TCs
    )(ids, table)

    return out_flat[:N].reshape(B, S, d_model)


if __name__ == "__main__":
    # Small shapes consistent with the module: vocab=64, d_model=32, batch=2, seq=8.
    d_model = 32
    vocab_size = 64
    batch, seq = 2, 8

    key = jax.random.PRNGKey(0)
    k_tab, k_ids = jax.random.split(key)

    # PyTorch nn.Embedding weight shape: (vocab, d_model).
    table = jax.random.normal(k_tab, (vocab_size, d_model), dtype=jnp.float32)
    x = jax.random.randint(k_ids, (batch, seq), 0, vocab_size, dtype=jnp.int32)

    out = token_embedding(x, table)
    out = jax.block_until_ready(out)

    # Reference: plain-JAX embedding lookup * sqrt(d_model).
    ref = jnp.take(table, x, axis=0) * math.sqrt(d_model)
    assert out.shape == (batch, seq, d_model)
    assert jnp.allclose(out, ref, atol=1e-5, rtol=1e-5)

    print("KERNEL_OK")
</pallas_src>

<mosaic_0001>
module attributes {stable_mosaic.version = 11 : i64} {
  func.func @_gather_embed_kernel(%arg0: i32, %arg1: memref<16xi32, #tpu.memory_space<smem>>, %arg2: memref<64x32xf32, #tpu.memory_space<any>>, %arg3: memref<16x32xf32, #tpu.memory_space<vmem>>, %arg4: memref<16x32xf32, #tpu.memory_space<vmem>>, %arg5: memref<!tpu.dma_semaphore, #tpu.memory_space<semaphore_mem>>) attributes {dimension_semantics = [#tpu.dimension_semantics<parallel>], iteration_bounds = array<i64: 1>, scalar_prefetch = 1 : i64, scratch_operands = 2 : i64, tpu.core_type = #tpu.core_type<tc>, window_params = [{}, {transform_indices = @transform_1, window_bounds = array<i64: 16, 32>}]} {
    %c16_i32 = arith.constant 16 : i32
    %0 = arith.muli %arg0, %c16_i32 : i32
    %c0_i32 = arith.constant 0 : i32
    %c16_i32_0 = arith.constant 16 : i32
    %1 = arith.addi %c0_i32, %c16_i32_0 : i32
    %c1_i32 = arith.constant 1 : i32
    scf.for %arg6 = %c0_i32 to %1 step %c1_i32  : i32 {
      %c1_i32_9 = arith.constant 1 : i32
      %7 = arith.muli %arg6, %c1_i32_9 : i32
      %c0_i32_10 = arith.constant 0 : i32
      %8 = arith.addi %c0_i32_10, %7 : i32
      %9 = arith.addi %0, %8 : i32
      %10 = arith.index_cast %9 : i32 to index
      %11 = memref.load %arg1[%10] : memref<16xi32, #tpu.memory_space<smem>>
      %c0_i32_11 = arith.constant 0 : i32
      %12 = tpu.memref_slice %arg2[%11, %c0_i32_11] : memref<64x32xf32, #tpu.memory_space<any>> -> memref<1x32xf32, #tpu.memory_space<any>>
      %c0_i32_12 = arith.constant 0 : i32
      %13 = tpu.memref_slice %arg4[%8, %c0_i32_12] : memref<16x32xf32, #tpu.memory_space<vmem>> -> memref<1x32xf32, #tpu.memory_space<vmem>>
      tpu.enqueue_dma source(%12 : memref<1x32xf32, #tpu.memory_space<any>>) target(%13 : memref<1x32xf32, #tpu.memory_space<vmem>>) target_semaphore(%arg5 : memref<!tpu.dma_semaphore, #tpu.memory_space<semaphore_mem>>)
    }
    %c16_i32_1 = arith.constant 16 : i32
    %c0_i32_2 = arith.constant 0 : i32
    %c16_i32_3 = arith.constant 16 : i32
    %2 = arith.addi %c0_i32_2, %c16_i32_3 : i32
    %c1_i32_4 = arith.constant 1 : i32
    scf.for %arg6 = %c0_i32_2 to %2 step %c1_i32_4  : i32 {
      %c1_i32_9 = arith.constant 1 : i32
      %7 = arith.muli %arg6, %c1_i32_9 : i32
      %c0_i32_10 = arith.constant 0 : i32
      %8 = arith.addi %c0_i32_10, %7 : i32
      %c0_i32_11 = arith.constant 0 : i32
      %c0_i32_12 = arith.constant 0 : i32
      %9 = tpu.memref_slice %arg2[%c0_i32_11, %c0_i32_12] : memref<64x32xf32, #tpu.memory_space<any>> -> memref<1x32xf32, #tpu.memory_space<any>>
      %c0_i32_13 = arith.constant 0 : i32
      %10 = tpu.memref_slice %arg4[%8, %c0_i32_13] : memref<16x32xf32, #tpu.memory_space<vmem>> -> memref<1x32xf32, #tpu.memory_space<vmem>>
      tpu.wait_dma2 semaphore(%arg5 : memref<!tpu.dma_semaphore, #tpu.memory_space<semaphore_mem>>) src(%9 : memref<1x32xf32, #tpu.memory_space<any>>) dst(%10 : memref<1x32xf32, #tpu.memory_space<vmem>>)
    }
    %c16_i32_5 = arith.constant 16 : i32
    %c0 = arith.constant 0 : index
    %c0_6 = arith.constant 0 : index
    %3 = vector.load %arg4[%c0, %c0_6] : memref<16x32xf32, #tpu.memory_space<vmem>>, vector<16x32xf32>
    %cst = arith.constant 5.65685415 : f32
    %4 = vector.broadcast %cst : f32 to vector<16x32xf32>
    %5 = arith.mulf %3, %4 : vector<16x32xf32>
    %c0_7 = arith.constant 0 : index
    %c0_8 = arith.constant 0 : index
    %6 = vector.load %arg3[%c0_7, %c0_8] : memref<16x32xf32, #tpu.memory_space<vmem>>, vector<16x32xf32>
    tpu.vector_store %arg3[%c0_7, %c0_8], %5 {strides = array<i32>} : memref<16x32xf32, #tpu.memory_space<vmem>>, vector<16x32xf32>,
    return
  }
  func.func @transform_1(%arg0: i32, %arg1: memref<16xi32, #tpu.memory_space<smem>>) -> (i32, i32) {
    %c0_i32 = arith.constant 0 : i32
    %c0_i32_0 = arith.constant 0 : i32
    return %arg0, %c0_i32 : i32, i32
  }
}

</mosaic_0001>

<llo_original>
// kernel: tpu_custom_call.1
$region0: #{tpu_custom_call.1}
  #allocation0 [shape = 'u32[]', space=smem, size = 0x4, offset = 0x4, fixed_abs, tag = 'smem constant byte address 0x4 - core index']
  #allocation1 [shape = 'u32[144,128]{1,0:T(1,128)}', space=vmem, size = 0x12000, scoped, tag = 'internal scratch']
  #allocation2 [shape = 'f32[16,32]{1,0:T(8,128)}', space=vmem, size = 0x2000, scoped, tag = 'scratch operand']
  #allocation3 [shape = 's32[1]{0}', space=sflag, size = 0x4, scoped, tag = 'scratch operand']
  #allocation4 [shape = 's32[1]{0}', space=sflag, size = 0x4, scoped, tag = 'scoped memory for tpu_custom_call.1']
  #allocation5 [shape = 'u8[512]{0}', space=smem, size = 0x200, scoped, tag = 'prefetched SMEM operand 0']
  #allocation8 [shape = 's32[]', space=sflag, size = 0x4, offset = 0, fixed_abs, tag = 'sflag constant byte address 0x0 - dummy sync flag']
  %s0 = inlined_call_operand.vmem [shape: s32[16], index: 0, kind: input, shape index: {}]
  %s1 = inlined_call_operand.vmem [shape: f32[64,32], index: 1, kind: input, shape index: {}]
  %s2 = inlined_call_operand.hbm [shape: f32[16,32], index: 2, kind: output, shape index: {}]
  %s3 = sld [smem:[#allocation0]]
  $region54: #{tpu_custom_call.1} parent=0
    _
  %s5 = ssub.s32 1, %s3
  %s6 = scalar_select 0, %s5, %s3
  %s7 = sshll.u32 %s0, 4
  %s8 = int_to_ptr.vmem [resolvable:$true] %s7
  %10 = dma.vmem_to_smem %s8, 16, [#allocation5], [#allocation4]
  %11 = dma.done [#allocation4], 16
  %12 = sfence
  $region1: #{tpu_custom_call.1} parent=0
    #allocation6 [shape = 'u8[8192]{0}', space=vmem, size = 0x2000, scoped, tag = 'output window, operand 0, single buffered']
    #allocation7 [shape = 's32[1]{0}', space=sflag, size = 0x4, scoped, tag = 'scoped memory for tpu_custom_call.1']
    %13 = vsyncpa [#allocation7], 0
    %s14 = smul.u32 0, 16
    loop: start=0, step=1, limit=16
    $region2: #{tpu_custom_call.1} parent=1 // loop_pre_header
      _
    $region3: #{tpu_custom_call.1} parent=1 // loop_header
      %s16 = sphi 0, %s20
      %p17 = scmp.ge.s32.totalorder %s16, 16
    $region4: #{tpu_custom_call.1} parent=1 // loop_header_branch
      %19 = sbr.rel (%p17) target = $region8
    $region5: #{tpu_custom_call.1} parent=1 // loop_body
      %s21 = sadd.s32 %s14, %s16
      %s22 = sld [smem:[#allocation5 + %s21]]
      %s23 = scalar_lea.vmem %s1, %s22
      %s24 = scalar_lea.vmem [#allocation2], %s16
      %p26 = scmp.lt.u32.totalorder 1, 8
      %p27 = pneg %p26
      // Predicated region
      $region9: #{tpu_custom_call.1} parent=5 // pred_check
        _
      $region10: #{tpu_custom_call.1} parent=5 // pred_check_branch
        %29 = sbr.rel (%p26) target = $region12
      $region11: #{tpu_custom_call.1} parent=5 // pred_region
        %s44 = sand.u32 1, 7
        %p45 = scmp.eq.s32.totalorder %s44, 0
        %p46 = pneg %p45
        // Predicated region
        $region24: #{tpu_custom_call.1} parent=11 // pred_check
          _
        $region25: #{tpu_custom_call.1} parent=11 // pred_check_branch
          %48 = sbr.rel (%p45) target = $region27
        $region26: #{tpu_custom_call.1} parent=11 // pred_region
          %s49 = sand.u32 1, 7
          %s50 = ssub.s32 1, %s49
          %s51 = scalar_lea.vmem %s23, %s50
          %s52 = ssub.s32 1, %s49
          %s53 = scalar_lea.vmem %s24, %s52 [#allocation2]
          %s54 = sshllo.u32 0, %s49
          loop: start=0, step=1, limit=1
          $region28: #{tpu_custom_call.1} parent=26 // loop_pre_header
            _
          $region29: #{tpu_custom_call.1} parent=26 // loop_header
            %s56 = sphi 0, %s60
            %p57 = scmp.ge.s32.totalorder %s56, 1
            %s61 = sphi %s51, %s51
            %s62 = sphi %s53, %s53
          $region30: #{tpu_custom_call.1} parent=26 // loop_header_branch
            %59 = sbr.rel (%p57) target = $region34
          $region31: #{tpu_custom_call.1} parent=26 // loop_body
            %v63 = vld [vmem:[%s61] sm:%s54]
            %64 = vst [vmem:[%s62] sm:%s54] %v63
          $region32: #{tpu_custom_call.1} parent=26 // loop_footer
            %s60 = sadd.s32 1, %s56
          $region33: #{tpu_custom_call.1} parent=26 // loop_footer_branch
            %55 = sbr.rel target = $region29
          $region34: #{tpu_custom_call.1} parent=26 // loop_exit
            _
        $region27: #{tpu_custom_call.1} parent=11 // pred_fallthru
          _
      $region12: #{tpu_custom_call.1} parent=5 // pred_fallthru
        _
      // Predicated region
      $region13: #{tpu_custom_call.1} parent=5 // pred_check
        %p30 = pneg %p26
      $region14: #{tpu_custom_call.1} parent=5 // pred_check_branch
        %32 = sbr.rel (%p30) target = $region16
      $region15: #{tpu_custom_call.1} parent=5 // pred_region
        %s33 = sshllo.u32 0, 1
        loop: start=0, step=1, limit=1
        $region17: #{tpu_custom_call.1} parent=15 // loop_pre_header
          _
        $region18: #{tpu_custom_call.1} parent=15 // loop_header
          %s35 = sphi 0, %s39
          %p36 = scmp.ge.s32.totalorder %s35, 1
          %s40 = sphi %s23, %s23
          %s41 = sphi %s24, %s24
        $region19: #{tpu_custom_call.1} parent=15 // loop_header_branch
          %38 = sbr.rel (%p36) target = $region23
        $region20: #{tpu_custom_call.1} parent=15 // loop_body
          %v42 = vld [vmem:[%s40] sm:%s33]
          %43 = vst [vmem:[%s41] sm:%s33] %v42
        $region21: #{tpu_custom_call.1} parent=15 // loop_footer
          %s39 = sadd.s32 1, %s35
        $region22: #{tpu_custom_call.1} parent=15 // loop_footer_branch
          %34 = sbr.rel target = $region18
        $region23: #{tpu_custom_call.1} parent=15 // loop_exit
          _
      $region16: #{tpu_custom_call.1} parent=5 // pred_fallthru
        _
      // Predicated region
      $region35: #{tpu_custom_call.1} parent=5 // pred_check
        _
      $region36: #{tpu_custom_call.1} parent=5 // pred_check_branch
        %67 = sbr.rel (0) target = $region38
      $region37: #{tpu_custom_call.1} parent=5 // pred_region
        %68 = vsyncadd [#allocation3], 16
      $region38: #{tpu_custom_call.1} parent=5 // pred_fallthru
        _
    $region6: #{tpu_custom_call.1} parent=1 // loop_footer
      %s20 = sadd.s32 1, %s16
    $region7: #{tpu_custom_call.1} parent=1 // loop_footer_branch
      %15 = sbr.rel target = $region3
    $region8: #{tpu_custom_call.1} parent=1 // loop_exit
      _
    loop: start=0, step=1, limit=16
    $region39: #{tpu_custom_call.1} parent=1 // loop_pre_header
      _
    $region40: #{tpu_custom_call.1} parent=1 // loop_header
      %s70 = sphi 0, %s74
      %p71 = scmp.ge.s32.totalorder %s70, 16
    $region41: #{tpu_custom_call.1} parent=1 // loop_header_branch
      %73 = sbr.rel (%p71) target = $region45
    $region42: #{tpu_custom_call.1} parent=1 // loop_body
      %s75 = smul.u32 1, 1
      %s76 = sshll.u32 %s75, 4
      %77 = dma.done [#allocation3], %s76
    $region43: #{tpu_custom_call.1} parent=1 // loop_footer
      %s74 = sadd.s32 1, %s70
    $region44: #{tpu_custom_call.1} parent=1 // loop_footer_branch
      %69 = sbr.rel target = $region40
    $region45: #{tpu_custom_call.1} parent=1 // loop_exit
      _
    %v78 = vld [vmem:[#allocation2] sm:$0xff]
    %v79 = vld [vmem:[#allocation2 + $0x8] sm:$0xff]
    %v80 = vmul.f32 %v78, 5.656854
    %v81 = vmul.f32 %v79, 5.656854
    %vm82 = vcmask 261120
    %83 = vst.msk [vmem:[#allocation6] sm:$0xff] %vm82, %v80
    %84 = vst.msk [vmem:[#allocation6 + $0x8] sm:$0xff] %vm82, %v81
    // Predicated region
    $region46: #{tpu_custom_call.1} parent=1 // pred_check
      _
    $region47: #{tpu_custom_call.1} parent=1 // pred_check_branch
      %86 = sbr.rel (0) target = $region49
    $region48: #{tpu_custom_call.1} parent=1 // pred_region
      %s88 = ssub.s32 256, 256
      %89 = vsyncadd [#allocation7], %s88
      %s90 = sshll.u32 [#allocation6], 4
      %s91 = int_to_ptr.vmem [resolvable:$true] %s90
      %96 = dma.vmem_to_hbm [thread:$0]  %s91, 256, %s2, [#allocation7], 128, 128, 8
    $region49: #{tpu_custom_call.1} parent=1 // pred_fallthru
      _
    // Predicated region
    $region50: #{tpu_custom_call.1} parent=1 // pred_check
      _
    $region51: #{tpu_custom_call.1} parent=1 // pred_check_branch
      %98 = sbr.rel (0) target = $region53
    $region52: #{tpu_custom_call.1} parent=1 // pred_region
      %99 = dma.done [#allocation7], 256
    $region53: #{tpu_custom_call.1} parent=1 // pred_fallthru
      _
    %100 = vsyncpa [#allocation7], 1
  %101 = vsyncmov [#allocation3]
  %s102 = vpop.sfrf %101
  %p103 = scmp.eq.s32.totalorder %s102, 0
  %p104 = pneg %p103
  %106 = shalt.err (%p104)

</llo_original>
